<compile_context>
chip_gen: v7x
topology: tpu7x:2x2x1
jax: 0.10.0
libtpu: 0.0.40
codegen_flags: <defaults>
</compile_context>

<pallas_src>
import functools

import jax
import jax.numpy as jnp
from jax import lax
from jax.experimental import pallas as pl
from jax.experimental.pallas import tpu as pltpu


def _ntxent_kernel(q_ref, pos_ref, k_ref, out_ref, *, inv_tau, n_pad):
    q = q_ref[...]                       # (tile_q, D) f32, already L2-normalized
    p = pos_ref[...]                     # (tile_q, D) f32, paired (positive) rows
    kdtype = k_ref.dtype

    # Fold 1/tau into the small operand; quantize once to the MXU dtype.
    qs = (q * inv_tau).astype(kdtype)

    # (tile_q, n_total_pad) temperature-scaled cosine logits on the MXU.
    # Key consumed directly from VMEM in its storage dtype (bf16 by default).
    logits = lax.dot_general(qs, k_ref[...], (((1,), (1,)), ((), ())),
                             preferred_element_type=jnp.float32)

    # Positive logit via the paired-row dot in f32 (no full-row select/reduce).
    pos_logit = inv_tau * jnp.sum(q * p, axis=-1, keepdims=True)

    # Self logit reproduced from the exact quantized operands the MXU consumes.
    # After L2-norm it is the row max (up to quantization noise), so it serves
    # as the logsumexp shift, and exp(self - self) == 1 is subtracted to drop
    # the self-similarity term from the denominator (no mask, no row-max pass).
    qs_f = qs.astype(jnp.float32)
    ks_f = q.astype(kdtype).astype(jnp.float32)      # == this row of the key matrix
    c = jnp.sum(qs_f * ks_f, axis=-1, keepdims=True)            # (tile_q, 1)

    s_all = jnp.sum(jnp.exp(logits - c), axis=-1, keepdims=True)
    denom = s_all - 1.0                                          # remove self term
    if n_pad > 0:
        # Zero-padded key rows give logit == 0 exactly -> each contributes
        # exp(0 - c); remove them in closed form (no column mask needed).
        denom = denom - jnp.float32(n_pad) * jnp.exp(-c)
    denom = jnp.maximum(denom, jnp.float32(1e-30))

    out_ref[...] = c + jnp.log(denom) - pos_logit                # per-row loss


def _round_up(x: int, m: int) -> int:
    return ((x + m - 1) // m) * m


def ntxent_loss(e1, e2, tau, weight=1.0, num_stability=False, *,
                use_bf16_matmul=True):
    """NT-Xent loss over paired embeddings e1, e2 of shape (B, D)."""
    n_pairs, d = e1.shape
    assert e2.shape == (n_pairs, d)
    n_total = 2 * n_pairs

    # Pad each half so the row-tile is MXU friendly and divides the half.
    if n_pairs >= 128:
        half_pad = _round_up(n_pairs, 128)
        tile_q = 128
    else:
        half_pad = _round_up(n_pairs, 8)
        tile_q = half_pad
    pad = half_pad - n_pairs
    n_total_pad = 2 * half_pad
    n_blocks = n_total_pad // tile_q
    half_blocks = n_blocks // 2

    # Normalize once in the wrapper (hoisted out of the kernel).  Padded rows
    # are exact zeros, so their normalized value (and every logit) is 0.
    z = jnp.concatenate([e1, e2], axis=0).astype(jnp.float32)
    zn = z * lax.rsqrt(jnp.maximum(jnp.sum(z * z, axis=-1, keepdims=True),
                                   jnp.float32(1e-24)))
    if pad:
        zeros = jnp.zeros((pad, d), jnp.float32)
        zn = jnp.concatenate([zn[:n_pairs], zeros, zn[n_pairs:], zeros], axis=0)

    # Key operand: bf16 by default (native MXU rate, half the VMEM footprint).
    key = zn.astype(jnp.bfloat16) if use_bf16_matmul else zn

    # TODO(synk): `num_stability` — the kernel always uses a shift-stabilized
    # logsumexp (shift = self logit, the row max), mathematically identical.
    kernel = functools.partial(_ntxent_kernel, inv_tau=1.0 / float(tau),
                               n_pad=2 * pad)

    def q_map(i):
        return (i, 0)

    def pos_map(i):
        return ((i + half_blocks) % n_blocks, 0)

    def k_map(i):
        return (0, 0)

    # Explicit VMEM budget: (double-buffered) resident key + small row blocks
    # + the (tile_q x n_total_pad) logits slab, with headroom.
    key_bytes = 2 * n_total_pad * d * key.dtype.itemsize
    blk_bytes = 2 * 2 * tile_q * d * 4 + 2 * tile_q * 4
    slab_bytes = 2 * tile_q * n_total_pad * 4
    vmem_limit = int(min(max(key_bytes + blk_bytes + slab_bytes + (8 << 20),
                             32 << 20), 100 << 20))

    per_row = pl.pallas_call(
        kernel,
        out_shape=jax.ShapeDtypeStruct((n_total_pad, 1), jnp.float32),
        grid_spec=pltpu.PrefetchScalarGridSpec(
            num_scalar_prefetch=0,
            grid=(n_blocks,),
            in_specs=[
                pl.BlockSpec((tile_q, d), q_map),        # query rows (f32)
                pl.BlockSpec((tile_q, d), pos_map),      # paired positive rows
                pl.BlockSpec((n_total_pad, d), k_map),   # full key, VMEM resident
            ],
            out_specs=pl.BlockSpec((tile_q, 1), q_map),
        ),
        compiler_params=pltpu.CompilerParams(
            dimension_semantics=("parallel",),
            vmem_limit_bytes=vmem_limit),
    )(zn, zn, key)

    # Mean over the 2B real rows only (padded rows statically sliced away).
    total = (jnp.sum(per_row[:n_pairs]) +
             jnp.sum(per_row[half_pad:half_pad + n_pairs]))
    return weight * total / n_total


class NTXentLoss:
    """Mirror of the PyTorch module's constructor/forward signature."""

    def __init__(self, tau, weight=1.0, num_stability=False):
        self.tau = tau
        self.weight = weight
        self.num_stability = num_stability

    def __call__(self, e1, e2):
        return ntxent_loss(e1, e2, self.tau, self.weight, self.num_stability)


def _ntxent_reference(e1, e2, tau, weight=1.0):
    z = jnp.concatenate([e1, e2], axis=0).astype(jnp.float32)
    zn = z * lax.rsqrt(jnp.maximum(jnp.sum(z * z, axis=-1, keepdims=True), 1e-24))
    n_tot = zn.shape[0]
    n_pairs = n_tot // 2
    logits = jnp.dot(zn, zn.T, precision=lax.Precision.HIGHEST) / tau
    masked = jnp.where(jnp.eye(n_tot, dtype=bool), jnp.float32(-1e30), logits)
    pos_idx = (jnp.arange(n_tot) + n_pairs) % n_tot
    pos = jnp.take_along_axis(logits, pos_idx[:, None], axis=1)[:, 0]
    lse = jax.scipy.special.logsumexp(masked, axis=-1)
    return weight * jnp.mean(lse - pos)


if __name__ == "__main__":
    key = jax.random.PRNGKey(0)
    k1, k2, k3, k4, k5, k6 = jax.random.split(key, 6)

    # 1) Small shapes consistent with the module: batch=8 embedding pairs, D=32.
    B, D = 8, 32
    e1 = jax.random.normal(k1, (B, D), dtype=jnp.float32)
    e2 = jax.random.normal(k2, (B, D), dtype=jnp.float32)
    loss_fn = NTXentLoss(tau=0.5, weight=1.0, num_stability=True)
    out = jax.block_until_ready(loss_fn(e1, e2))
    ref = _ntxent_reference(e1, e2, 0.5, weight=1.0)
    assert jnp.allclose(out, ref, rtol=1e-2, atol=1e-2), (out, ref)   # bf16 MXU path
    out_f32 = jax.block_until_ready(
        ntxent_loss(e1, e2, 0.5, use_bf16_matmul=False))
    assert jnp.allclose(out_f32, ref, rtol=2e-3, atol=2e-3), (out_f32, ref)

    # 2) Larger case exercising the tiled, multi-block parallel grid path.
    B2, D2 = 256, 128
    f1 = jax.random.normal(k3, (B2, D2), dtype=jnp.float32)
    f2 = jax.random.normal(k4, (B2, D2), dtype=jnp.float32)
    out2 = jax.block_until_ready(ntxent_loss(f1, f2, 0.1, weight=2.0))
    ref2 = _ntxent_reference(f1, f2, 0.1, weight=2.0)
    assert jnp.allclose(out2, ref2, rtol=1e-2, atol=1e-2), (out2, ref2)
    out2_f32 = jax.block_until_ready(
        ntxent_loss(f1, f2, 0.1, weight=2.0, use_bf16_matmul=False))
    assert jnp.allclose(out2_f32, ref2, rtol=2e-3, atol=2e-3), (out2_f32, ref2)

    # 3) Awkward batch size exercising padding + closed-form pad correction.
    B3, D3 = 100, 64
    g1 = jax.random.normal(k5, (B3, D3), dtype=jnp.float32)
    g2 = jax.random.normal(k6, (B3, D3), dtype=jnp.float32)
    out3 = jax.block_until_ready(ntxent_loss(g1, g2, 0.5))
    ref3 = _ntxent_reference(g1, g2, 0.5)
    assert jnp.allclose(out3, ref3, rtol=1e-2, atol=1e-2), (out3, ref3)

    print("KERNEL_OK")
</pallas_src>

<mosaic_0001>
module attributes {stable_mosaic.version = 11 : i64} {
  func.func @_ntxent_kernel(%arg0: i32, %arg1: memref<8x32xf32, #tpu.memory_space<vmem>>, %arg2: memref<8x32xf32, #tpu.memory_space<vmem>>, %arg3: memref<16x32xbf16, #tpu.memory_space<vmem>>, %arg4: memref<8x1xf32, #tpu.memory_space<vmem>>) attributes {dimension_semantics = [#tpu.dimension_semantics<parallel>], iteration_bounds = array<i64: 2>, scalar_prefetch = 0 : i64, scratch_operands = 0 : i64, tpu.core_type = #tpu.core_type<tc>, window_params = [{transform_indices = @transform_0, window_bounds = array<i64: 8, 32>}, {transform_indices = @transform_1, window_bounds = array<i64: 8, 32>}, {pipeline_mode = #tpu.pipeline_mode<synchronous>, transform_indices = @transform_2, window_bounds = array<i64: 16, 32>}, {transform_indices = @transform_3, window_bounds = array<i64: 8, 1>}]} {
    %c0 = arith.constant 0 : index
    %c0_0 = arith.constant 0 : index
    %0 = vector.load %arg1[%c0, %c0_0] : memref<8x32xf32, #tpu.memory_space<vmem>>, vector<8x32xf32>
    %c0_1 = arith.constant 0 : index
    %c0_2 = arith.constant 0 : index
    %1 = vector.load %arg2[%c0_1, %c0_2] : memref<8x32xf32, #tpu.memory_space<vmem>>, vector<8x32xf32>
    %cst = arith.constant 2.000000e+00 : f32
    %2 = vector.broadcast %cst : f32 to vector<8x32xf32>
    %3 = arith.mulf %0, %2 : vector<8x32xf32>
    %4 = arith.truncf %3 : vector<8x32xf32> to vector<8x32xbf16>
    %c0_3 = arith.constant 0 : index
    %c0_4 = arith.constant 0 : index
    %5 = vector.load %arg3[%c0_3, %c0_4] : memref<16x32xbf16, #tpu.memory_space<vmem>>, vector<16x32xbf16>
    %cst_5 = arith.constant dense<0.000000e+00> : vector<8x16xf32>
    %6 = tpu.matmul %4, %5, %cst_5 {dimension_numbers = #tpu.dot_dimension_numbers<[1], [1], [0], [0], [0, 0, 1, 0], [], []>} : vector<8x32xbf16>, vector<16x32xbf16>, vector<8x16xf32> -> vector<8x16xf32>
    %7 = arith.mulf %0, %1 : vector<8x32xf32>
    %cst_6 = arith.constant dense<0.000000e+00> : vector<8xf32>
    %8 = vector.multi_reduction <add>, %7, %cst_6 [1] : vector<8x32xf32> to vector<8xf32>
    %9 = vector.shape_cast %8 : vector<8xf32> to vector<8x1xf32>
    %cst_7 = arith.constant 2.000000e+00 : f32
    %10 = vector.broadcast %cst_7 : f32 to vector<8x1xf32>
    %11 = arith.mulf %10, %9 : vector<8x1xf32>
    %12 = arith.extf %4 : vector<8x32xbf16> to vector<8x32xf32>
    %13 = arith.truncf %0 : vector<8x32xf32> to vector<8x32xbf16>
    %14 = arith.extf %13 : vector<8x32xbf16> to vector<8x32xf32>
    %15 = arith.mulf %12, %14 : vector<8x32xf32>
    %cst_8 = arith.constant dense<0.000000e+00> : vector<8xf32>
    %16 = vector.multi_reduction <add>, %15, %cst_8 [1] : vector<8x32xf32> to vector<8xf32>
    %17 = vector.shape_cast %16 : vector<8xf32> to vector<8x1xf32>
    %18 = vector.broadcast %17 : vector<8x1xf32> to vector<8x16xf32>
    %19 = arith.subf %6, %18 : vector<8x16xf32>
    %20 = math.exp %19 : vector<8x16xf32>
    %cst_9 = arith.constant dense<0.000000e+00> : vector<8xf32>
    %21 = vector.multi_reduction <add>, %20, %cst_9 [1] : vector<8x16xf32> to vector<8xf32>
    %22 = vector.shape_cast %21 : vector<8xf32> to vector<8x1xf32>
    %cst_10 = arith.constant 1.000000e+00 : f32
    %23 = vector.broadcast %cst_10 : f32 to vector<8x1xf32>
    %24 = arith.subf %22, %23 : vector<8x1xf32>
    %cst_11 = arith.constant 1.000000e-30 : f32
    %25 = vector.broadcast %cst_11 : f32 to vector<8x1xf32>
    %26 = arith.maximumf %24, %25 : vector<8x1xf32>
    %27 = math.log %26 : vector<8x1xf32>
    %28 = arith.addf %17, %27 : vector<8x1xf32>
    %29 = arith.subf %28, %11 : vector<8x1xf32>
    %c0_12 = arith.constant 0 : index
    %c0_13 = arith.constant 0 : index
    %30 = vector.load %arg4[%c0_12, %c0_13] : memref<8x1xf32, #tpu.memory_space<vmem>>, vector<8x1xf32>
    tpu.vector_store %arg4[%c0_12, %c0_13], %29 {strides = array<i32>} : memref<8x1xf32, #tpu.memory_space<vmem>>, vector<8x1xf32>,
    return
  }
  func.func @transform_0(%arg0: i32) -> (i32, i32) {
    %c0_i32 = arith.constant 0 : i32
    %c0_i32_0 = arith.constant 0 : i32
    return %arg0, %c0_i32 : i32, i32
  }
  func.func @transform_1(%arg0: i32) -> (i32, i32) {
    %c1_i32 = arith.constant 1 : i32
    %0 = arith.addi %arg0, %c1_i32 : i32
    %c2_i32 = arith.constant 2 : i32
    %c0_i32 = arith.constant 0 : i32
    %1 = arith.cmpi eq, %c2_i32, %c0_i32 : i32
    %c1_i32_0 = arith.constant 1 : i32
    %2 = arith.select %1, %c1_i32_0, %c2_i32 : i32
    %3 = arith.remsi %0, %2 : i32
    %c0_i32_1 = arith.constant 0 : i32
    %4 = arith.cmpi ne, %3, %c0_i32_1 : i32
    %c0_i32_2 = arith.constant 0 : i32
    %5 = arith.cmpi slt, %3, %c0_i32_2 : i32
    %c0_i32_3 = arith.constant 0 : i32
    %6 = arith.cmpi slt, %2, %c0_i32_3 : i32
    %7 = arith.xori %5, %6 : i1
    %8 = arith.andi %7, %4 : i1
    %9 = arith.addi %3, %2 : i32
    %10 = arith.select %8, %9, %3 : i32
    %c0_i32_4 = arith.constant 0 : i32
    %c0_i32_5 = arith.constant 0 : i32
    return %10, %c0_i32_4 : i32, i32
  }
  func.func @transform_2(%arg0: i32) -> (i32, i32) {
    %c0_i32 = arith.constant 0 : i32
    %c0_i32_0 = arith.constant 0 : i32
    %c0_i32_1 = arith.constant 0 : i32
    return %c0_i32, %c0_i32_0 : i32, i32
  }
  func.func @transform_3(%arg0: i32) -> (i32, i32) {
    %c0_i32 = arith.constant 0 : i32
    %c0_i32_0 = arith.constant 0 : i32
    return %arg0, %c0_i32 : i32, i32
  }
}

</mosaic_0001>

<llo_original>
// kernel: tpu_custom_call.1
$region0: #{tpu_custom_call.1}
  #allocation0 [shape = 'u32[]', space=smem, size = 0x4, offset = 0x4, fixed_abs, tag = 'smem constant byte address 0x4 - core index']
  #allocation1 [shape = 'u32[144,128]{1,0:T(1,128)}', space=vmem, size = 0x12000, scoped, tag = 'internal scratch']
  %s0 = inlined_call_operand.hbm [shape: f32[16,32], index: 0, kind: input, shape index: {}]
  %s1 = inlined_call_operand.hbm [shape: f32[16,32], index: 1, kind: input, shape index: {}]
  %s2 = inlined_call_operand.hbm [shape: bf16[16,32], index: 2, kind: input, shape index: {}]
  %s3 = inlined_call_operand.vmem [shape: f32[16,1], index: 3, kind: output, shape index: {}]
  %s4 = sld [smem:[#allocation0]]
  $region57: #{tpu_custom_call.1} parent=0
    _
  %s6 = ssub.s32 1, %s4
  %s7 = scalar_select 0, %s6, %s4
  $region1: #{tpu_custom_call.1} parent=0
    #allocation2 [shape = 'u8[8192]{0}', space=vmem, size = 0x2000, scoped, tag = 'input window, operand 0']
    #allocation3 [shape = 's32[2]{0}', space=sflag, size = 0x8, scoped, tag = 'scoped memory for tpu_custom_call.1']
    #allocation4 [shape = 'u8[8192]{0}', space=vmem, size = 0x2000, scoped, tag = 'input window, operand 1']
    #allocation5 [shape = 's32[2]{0}', space=sflag, size = 0x8, scoped, tag = 'scoped memory for tpu_custom_call.1']
    #allocation6 [shape = 'u8[4096]{0}', space=vmem, size = 0x1000, scoped, tag = 'input window, operand 2, single buffered']
    %8 = vsyncpa [#allocation3], 0
    %s9 = scalar_lea.sflag [#allocation3], 1
    %10 = vsyncpa %s9, 0
    %11 = vsyncpa [#allocation5], 0
    %s12 = scalar_lea.sflag [#allocation5], 1
    %13 = vsyncpa %s12, 0
    loop: start=0, step=1, limit=4
    $region2: #{tpu_custom_call.1} parent=1 // loop_pre_header
      _
    $region3: #{tpu_custom_call.1} parent=1 // loop_header
      %s15 = sphi 0, %s19
      %p16 = scmp.ge.s32.totalorder %s15, 4
      %s25 = sphi 0, %s27
      %s28 = sphi 0, %s25
      %s29 = sphi 0, %s28
      %s45 = sphi 0, %s29
      %s77 = sphi 0, %s79
      %s80 = sphi 0, %s77
      %s81 = sphi 0, %s80
      %s97 = sphi 0, %s81
      %s101 = sphi 0, %s101
      %s103 = sphi 0, %s101
      %s104 = sphi 0, %s103
      %s118 = sphi 0, %s104
      %s124 = sphi 0, %s126
      %s127 = sphi 0, %s124
      %s128 = sphi 0, %s127
      %s144 = sphi 0, %s128
    $region4: #{tpu_custom_call.1} parent=1 // loop_header_branch
      %18 = sbr.rel (%p16) target = $region8
    $region5: #{tpu_custom_call.1} parent=1 // loop_body
      %s20 = ssub.s32 %s15, 1
      %s21 = ssub.s32 %s15, 2
      %s22 = sadd.s32 %s15, 1
      %s23 = ssub.s32 %s15, %s22
      %p24 = scmp.eq.s32.totalorder %s23, 0
      %s26 = sadd.s32 %s25, 1
      %s27 = scalar_select %p24, %s25, %s26
      %p30 = pneg %p24
      %p31 = scmp.eq.s32.totalorder %s15, 1
      %p32 = por %p30, %p31
      %p33 = scmp.ne.s32.totalorder %s25, %s28
      %p34 = scmp.eq.s32.totalorder %s15, 0
      %p35 = por %p33, %p34
      %p36 = scmp.ne.s32.totalorder %s25, %s28
      %p37 = scmp.eq.s32.totalorder %s20, 1
      %p38 = por %p36, %p37
      %p39 = scmp.ne.s32.totalorder %s28, %s29
      %p40 = scmp.eq.s32.totalorder %s20, 0
      %p41 = por %p39, %p40
      %p42 = scmp.ne.s32.totalorder %s28, %s29
      %p43 = scmp.eq.s32.totalorder %s21, 1
      %p44 = por %p42, %p43
      %p46 = scmp.ne.s32.totalorder %s29, %s45
      %p47 = scmp.eq.s32.totalorder %s21, 0
      %p48 = por %p46, %p47
      %s49 = sadd.s32 %s15, 1
      %p50 = scmp.lt.s32.totalorder %s49, 0
      %s51 = ssub.s32 0, %s49
      %s52 = scalar_select %p50, %s51, %s49
      %s53 = sand.u32 %s52, 1
      %s54 = ssub.s32 0, %s53
      %s55 = scalar_select %p50, %s54, %s53
      %p56 = scmp.ne.s32.totalorder %s55, 0
      %p57 = scmp.lt.s32.totalorder %s55, 0
      %p58 = pnand %p57, %p56
      %p59 = pneg %p58
      %s60 = sadd.s32 %s55, 2
      %s61 = scalar_select %p59, %s60, %s55
      %s62 = sadd.s32 %s22, 1
      %p63 = scmp.lt.s32.totalorder %s62, 0
      %s64 = ssub.s32 0, %s62
      %s65 = scalar_select %p63, %s64, %s62
      %s66 = sand.u32 %s65, 1
      %s67 = ssub.s32 0, %s66
      %s68 = scalar_select %p63, %s67, %s66
      %p69 = scmp.ne.s32.totalorder %s68, 0
      %p70 = scmp.lt.s32.totalorder %s68, 0
      %p71 = pnand %p70, %p69
      %p72 = pneg %p71
      %s73 = sadd.s32 %s68, 2
      %s74 = scalar_select %p72, %s73, %s68
      %s75 = ssub.s32 %s61, %s74
      %p76 = scmp.eq.s32.totalorder %s75, 0
      %s78 = sadd.s32 %s77, 1
      %s79 = scalar_select %p76, %s77, %s78
      %p82 = pneg %p76
      %p83 = scmp.eq.s32.totalorder %s15, 1
      %p84 = por %p82, %p83
      %p85 = scmp.ne.s32.totalorder %s77, %s80
      %p86 = scmp.eq.s32.totalorder %s15, 0
      %p87 = por %p85, %p86
      %p88 = scmp.ne.s32.totalorder %s77, %s80
      %p89 = scmp.eq.s32.totalorder %s20, 1
      %p90 = por %p88, %p89
      %p91 = scmp.ne.s32.totalorder %s80, %s81
      %p92 = scmp.eq.s32.totalorder %s20, 0
      %p93 = por %p91, %p92
      %p94 = scmp.ne.s32.totalorder %s80, %s81
      %p95 = scmp.eq.s32.totalorder %s21, 1
      %p96 = por %p94, %p95
      %p98 = scmp.ne.s32.totalorder %s81, %s97
      %p99 = scmp.eq.s32.totalorder %s21, 0
      %p100 = por %p98, %p99
      %s102 = sadd.s32 %s101, 1
      %p105 = scmp.eq.s32.totalorder %s15, 1
      %p106 = scmp.ne.s32.totalorder %s101, %s103
      %p107 = scmp.eq.s32.totalorder %s15, 0
      %p108 = por %p106, %p107
      %p109 = scmp.ne.s32.totalorder %s101, %s103
      %p110 = scmp.eq.s32.totalorder %s20, 1
      %p111 = por %p109, %p110
      %p112 = scmp.ne.s32.totalorder %s103, %s104
      %p113 = scmp.eq.s32.totalorder %s20, 0
      %p114 = por %p112, %p113
      %p115 = scmp.ne.s32.totalorder %s103, %s104
      %p116 = scmp.eq.s32.totalorder %s21, 1
      %p117 = por %p115, %p116
      %p119 = scmp.ne.s32.totalorder %s104, %s118
      %p120 = scmp.eq.s32.totalorder %s21, 0
      %p121 = por %p119, %p120
      %s122 = ssub.s32 %s15, %s22
      %p123 = scmp.eq.s32.totalorder %s122, 0
      %s125 = sadd.s32 %s124, 1
      %s126 = scalar_select %p123, %s124, %s125
      %p129 = pneg %p123
      %p130 = scmp.eq.s32.totalorder %s15, 1
      %p131 = por %p129, %p130
      %p132 = scmp.ne.s32.totalorder %s124, %s127
      %p133 = scmp.eq.s32.totalorder %s15, 0
      %p134 = por %p132, %p133
      %p135 = scmp.ne.s32.totalorder %s124, %s127
      %p136 = scmp.eq.s32.totalorder %s20, 1
      %p137 = por %p135, %p136
      %p138 = scmp.ne.s32.totalorder %s127, %s128
      %p139 = scmp.eq.s32.totalorder %s20, 0
      %p140 = por %p138, %p139
      %p141 = scmp.ne.s32.totalorder %s127, %s128
      %p142 = scmp.eq.s32.totalorder %s21, 1
      %p143 = por %p141, %p142
      %p145 = scmp.ne.s32.totalorder %s128, %s144
      %p146 = scmp.eq.s32.totalorder %s21, 0
      %p147 = por %p145, %p146
      %p148 = scmp.le.s32.totalorder 1, %s15
      %p149 = scmp.lt.s32.totalorder %s15, 3
      %p150 = pnand %p148, %p149
      %p151 = pneg %p150
      // Predicated region
      $region9: #{tpu_custom_call.1} parent=5 // pred_check
        _
      $region10: #{tpu_custom_call.1} parent=5 // pred_check_branch
        %153 = sbr.rel (%p150) target = $region12
      $region11: #{tpu_custom_call.1} parent=5 // pred_region
        %s154 = ssub.s32 %s15, 1
        // Predicated region
        $region13: #{tpu_custom_call.1} parent=11 // pred_check
          %p155 = pneg %p114
        $region14: #{tpu_custom_call.1} parent=11 // pred_check_branch
          %157 = sbr.rel (%p155) target = $region16
        $region15: #{tpu_custom_call.1} parent=11 // pred_region
          %s159 = ssub.s32 128, 128
          %160 = vsyncadd [#allocation5], %s159
          %s161 = sshll.u32 [#allocation6], 4
          %s162 = int_to_ptr.vmem [resolvable:$true] %s161
          %167 = dma.hbm_to_vmem [thread:$0]  %s2, 128, %s162, [#allocation5], 64, 64, 4
        $region16: #{tpu_custom_call.1} parent=11 // pred_fallthru
          _
      $region12: #{tpu_custom_call.1} parent=5 // pred_fallthru
        _
      %p168 = scmp.lt.s32.totalorder %s15, 2
      // Predicated region
      $region17: #{tpu_custom_call.1} parent=5 // pred_check
        %p169 = pneg %p168
      $region18: #{tpu_custom_call.1} parent=5 // pred_check_branch
        %171 = sbr.rel (%p169) target = $region20
      $region19: #{tpu_custom_call.1} parent=5 // pred_region
        // Predicated region
        $region21: #{tpu_custom_call.1} parent=19 // pred_check
          %p172 = pneg %p35
        $region22: #{tpu_custom_call.1} parent=19 // pred_check_branch
          %174 = sbr.rel (%p172) target = $region24
        $region23: #{tpu_custom_call.1} parent=19 // pred_region
          %s175 = sand.u32 %s25, 1
          %s176 = scalar_lea.sflag [#allocation3], %s175
          %s177 = sand.u32 %s25, 1
          %s178 = smul.addr %s177, 8
          %s179 = scalar_lea.vmem [#allocation2], %s178
          %s181 = ssub.s32 128, 128
          %182 = vsyncadd %s176, %s181
          %s183 = smul.addr %s15, 128
          %s184 = scalar_lea.hbm %s0, %s183
          %s186 = sshll.u32 %s179, 4
          %s187 = int_to_ptr.vmem [resolvable:$true] %s186
          %189 = dma.hbm_to_vmem [thread:$0]  %s184, 128, %s187, %s176
        $region24: #{tpu_custom_call.1} parent=19 // pred_fallthru
          _
        // Predicated region
        $region25: #{tpu_custom_call.1} parent=19 // pred_check
          %p190 = pneg %p87
        $region26: #{tpu_custom_call.1} parent=19 // pred_check_branch
          %192 = sbr.rel (%p190) target = $region28
        $region27: #{tpu_custom_call.1} parent=19 // pred_region
          %s193 = sand.u32 %s15, 1
          %s194 = scalar_lea.sflag [#allocation5], %s193
          %s195 = sand.u32 %s77, 1
          %s196 = smul.addr %s195, 8
          %s197 = scalar_lea.vmem [#allocation4], %s196
          %s198 = sadd.s32 %s15, 1
          %p199 = scmp.lt.s32.totalorder %s198, 0
          %s200 = ssub.s32 0, %s198
          %s201 = scalar_select %p199, %s200, %s198
          %s202 = sand.u32 %s201, 1
          %s203 = ssub.s32 0, %s202
          %s204 = scalar_select %p199, %s203, %s202
          %p205 = scmp.ne.s32.totalorder %s204, 0
          %p206 = scmp.lt.s32.totalorder %s204, 0
          %p207 = pnand %p206, %p205
          %p208 = pneg %p207
          %s209 = sadd.s32 %s204, 2
          %s210 = scalar_select %p208, %s209, %s204
          %s212 = ssub.s32 128, 128
          %213 = vsyncadd %s194, %s212
          %s214 = smul.addr %s210, 128
          %s215 = scalar_lea.hbm %s1, %s214
          %s217 = sshll.u32 %s197, 4
          %s218 = int_to_ptr.vmem [resolvable:$true] %s217
          %220 = dma.hbm_to_vmem [thread:$0]  %s215, 128, %s218, %s194
        $region28: #{tpu_custom_call.1} parent=19 // pred_fallthru
          _
      $region20: #{tpu_custom_call.1} parent=5 // pred_fallthru
        _
      %p221 = scmp.le.s32.totalorder 1, %s15
      %p222 = scmp.lt.s32.totalorder %s15, 3
      %p223 = pnand %p221, %p222
      %p224 = pneg %p223
      // Predicated region
      $region29: #{tpu_custom_call.1} parent=5 // pred_check
        _
      $region30: #{tpu_custom_call.1} parent=5 // pred_check_branch
        %226 = sbr.rel (%p223) target = $region32
      $region31: #{tpu_custom_call.1} parent=5 // pred_region
        %s227 = ssub.s32 %s15, 1
        %s228 = sand.u32 %s28, 1
        %s229 = scalar_lea.sflag [#allocation3], %s228
        %s230 = sand.u32 %s28, 1
        %s231 = smul.addr %s230, 8
        %s232 = scalar_lea.vmem [#allocation2], %s231
        // Predicated region
        $region33: #{tpu_custom_call.1} parent=31 // pred_check
          %p233 = pneg %p41
        $region34: #{tpu_custom_call.1} parent=31 // pred_check_branch
          %235 = sbr.rel (%p233) target = $region36
        $region35: #{tpu_custom_call.1} parent=31 // pred_region
          %236 = dma.done %s229, 128
        $region36: #{tpu_custom_call.1} parent=31 // pred_fallthru
          _
        %s237 = sand.u32 %s20, 1
        %s238 = scalar_lea.sflag [#allocation5], %s237
        %s239 = sand.u32 %s80, 1
        %s240 = smul.addr %s239, 8
        %s241 = scalar_lea.vmem [#allocation4], %s240
        // Predicated region
        $region37: #{tpu_custom_call.1} parent=31 // pred_check
          %p242 = pneg %p93
        $region38: #{tpu_custom_call.1} parent=31 // pred_check_branch
          %244 = sbr.rel (%p242) target = $region40
        $region39: #{tpu_custom_call.1} parent=31 // pred_region
          %245 = dma.done %s238, 128
        $region40: #{tpu_custom_call.1} parent=31 // pred_fallthru
          _
        // Predicated region
        $region41: #{tpu_custom_call.1} parent=31 // pred_check
          %p246 = pneg %p114
        $region42: #{tpu_custom_call.1} parent=31 // pred_check_branch
          %248 = sbr.rel (%p246) target = $region44
        $region43: #{tpu_custom_call.1} parent=31 // pred_region
          %249 = dma.done [#allocation5], 128
        $region44: #{tpu_custom_call.1} parent=31 // pred_fallthru
          _
        %s250 = sand.u32 %s28, 1
        %s251 = scalar_lea.sflag [#allocation3], %s250
        %s252 = sand.u32 %s28, 1
        %s253 = smul.addr %s252, 8
        %s254 = scalar_lea.vmem [#allocation2], %s253
        %p255 = pneg %p41
        %p256 = pneg %p38
        %s257 = sand.u32 %s20, 1
        %s258 = scalar_lea.sflag [#allocation5], %s257
        %s259 = sand.u32 %s80, 1
        %s260 = smul.addr %s259, 8
        %s261 = scalar_lea.vmem [#allocation4], %s260
        %p262 = pneg %p93
        %p263 = pneg %p90
        %p264 = pneg %p114
        %p265 = pneg %p111
        %p266 = pneg %p140
        %p267 = pneg %p137
        %p268 = scmp.lt.s32.totalorder %s20, 1
        %s269 = scalar_select %p268, %s20, 1
        %s270 = smul.addr %s269, 8
        %s271 = scalar_lea.vmem %s3, %s270
        %s272 = sadd.s32 %s20, 1
        %p273 = scmp.lt.s32.totalorder %s272, 0
        %s274 = ssub.s32 0, %s272
        %s275 = scalar_select %p273, %s274, %s272
        %s276 = sand.u32 %s275, 1
        %s277 = ssub.s32 0, %s276
        %s278 = scalar_select %p273, %s277, %s276
        %p279 = scmp.ne.s32.totalorder %s278, 0
        %p280 = scmp.lt.s32.totalorder %s278, 0
        %p281 = pnand %p280, %p279
        %p282 = pneg %p281
        %s283 = sadd.s32 %s278, 2
        %s284 = scalar_select %p282, %s283, %s278
        %p285 = scmp.lt.s32.totalorder %s20, 1
        %s286 = scalar_select %p285, %s20, 1
        %s287 = smul.addr %s286, 8
        %s288 = scalar_lea.vmem %s3, %s287
        %v290 = vld [vmem:[%s232] sm:$0xff]
        %v291 = vld [vmem:[%s241] sm:$0xff]
        %v292 = vmul.f32 %v290, 2.0
        %v293 = vpack.c.bf16 %v292, %v292
        %v294 = vld [vmem:[#allocation6] sm:$0xf]
        %v295 = vld [vmem:[#allocation6 + $0x4] sm:$0xf]
        %v298 = vunpack.c.l.b16 %v294
        %v299 = vunpack.c.l.b16 %v295
        %v300 = vpack.c.b16 %v299, %v298
        %vm301 = vcmask 261120
        %v303 = vsel %vm301, %v293, 0
        %v306 = vsel %vm301, %v300, 0
        %308 = vmatprep.subr.bf16.mxu0 0
        %309 = vmatpush1.bf16.xpose.msra.mxu0 %v306
        %310 = vmatprep.subr.bf16.mxu0 0
        %311 = vmatpush1.bf16.xpose.msra.mxu0 0
        %312 = vmatprep.subr.bf16.mxu0 0
        %313 = vmatpush1.bf16.xpose.msra.mxu0 0
        %314 = vmatprep.subr.bf16.mxu0 0
        %315 = vmatpush1.bf16.xpose.msra.mxu0 0
        %316 = vmatprep.subr.bf16.mxu0 0
        %317 = vmatpush1.bf16.xpose.msra.mxu0 0
        %318 = vmatprep.subr.bf16.mxu0 0
        %319 = vmatpush1.bf16.xpose.msra.mxu0 0
        %320 = vmatprep.subr.bf16.mxu0 0
        %321 = vmatpush1.bf16.xpose.msra.mxu0 0
        %322 = vmatprep.subr.bf16.mxu0 0
        %323 = vmatpush1.bf16.xpose.msra.mxu0 0
        %324 = vmatprep.subr.bf16.mxu0 0
        %325 = vmatpush1.bf16.xpose.msra.mxu0 0
        %326 = vmatprep.subr.bf16.mxu0 0
        %327 = vmatpush1.bf16.xpose.msra.mxu0 0
        %328 = vmatprep.subr.bf16.mxu0 0
        %329 = vmatpush1.bf16.xpose.msra.mxu0 0
        %330 = vmatprep.subr.bf16.mxu0 0
        %331 = vmatpush1.bf16.xpose.msra.mxu0 0
        %332 = vmatprep.subr.bf16.mxu0 0
        %333 = vmatpush1.bf16.xpose.msra.mxu0 0
        %334 = vmatprep.subr.bf16.mxu0 0
        %335 = vmatpush1.bf16.xpose.msra.mxu0 0
        %336 = vmatprep.subr.bf16.mxu0 0
        %337 = vmatpush1.bf16.xpose.msra.mxu0 0
        %338 = vmatprep.subr.bf16.mxu0 0
        %339 = vmatpush1.bf16.xpose.msra.mxu0 0
        %340 = vmatprep.mubr.bf16.mxu0 0
        %341 = vmatmul.mubr.bf16.gmra.mrb[0].mxu0 %v303
        %v342 = vpop.f32.mrb[0].mxu0
        %v343 = vadd.f32 0.0, %v342
        %v344 = vpop.f32.mrb[0].mxu0
        %v345 = vpop.f32.mrb[0].mxu0
        %v346 = vpop.f32.mrb[0].mxu0
        %347 = vdwg.mxu0
        %v348 = vmul.f32 %v290, %v291
        %v349 = vsel %vm301, %v348, 0.0
        %350 = vadd.xlane.f32.xlu0 %v349
        %v351 = vpop.xlane.xlu0 %350
        %v352 = vmul.f32 %v351, 2.0
        %v353 = vunpack.c.l.bf16 %v293
        %v354 = vpack.c.bf16 %v290, %v290
        %v355 = vunpack.c.l.bf16 %v354
        %v356 = vmul.f32 %v353, %v355
        %v357 = vsel %vm301, %v356, 0.0
        %358 = vadd.xlane.f32.xlu0 %v357
        %v359 = vpop.xlane.xlu0 %358
        %v360 = vsub.f32 %v343, %v359
        %v361 = vmul.f32 %v360, 1.442695
        %v362 = vpow.pop %v361
        %vm363 = vcmask 130048
        %v364 = vsel %vm363, %v362, 0.0
        %365 = vadd.xlane.f32.xlu0 %v364
        %v366 = vpop.xlane.xlu0 %365
        %v367 = vsub.f32 %v366, 1.0
        %v368 = vmax.f32 %v367, 1e-30
        %v369 = vlog2.pop %v368
        %v370 = vmul.f32 %v369, 0.6931472
        %v371 = vadd.f32 %v359, %v370
        %v372 = vsub.f32 %v371, %v352
        %vm373 = vcmask 7168
        %374 = vst.msk [vmem:[%s288] sm:$0xff] %vm373, %v372
        %p375 = scmp.lt.s32.totalorder %s20, 1
        %s376 = scalar_select %p375, %s20, 1
        %s377 = smul.addr %s376, 8
        %s378 = scalar_lea.vmem %s3, %s377
        // Predicated region
        $region45: #{tpu_custom_call.1} parent=31 // pred_check
          %p379 = pneg %p137
        $region46: #{tpu_custom_call.1} parent=31 // pred_check_branch
          %381 = sbr.rel (%p379) target = $region48
        $region47: #{tpu_custom_call.1} parent=31 // pred_region
          _
        $region48: #{tpu_custom_call.1} parent=31 // pred_fallthru
          _
      $region32: #{tpu_custom_call.1} parent=5 // pred_fallthru
        _
      %p382 = scmp.le.s32.totalorder 2, %s15
      // Predicated region
      $region49: #{tpu_custom_call.1} parent=5 // pred_check
        %p383 = pneg %p382
      $region50: #{tpu_custom_call.1} parent=5 // pred_check_branch
        %385 = sbr.rel (%p383) target = $region52
      $region51: #{tpu_custom_call.1} parent=5 // pred_region
        %s386 = ssub.s32 %s15, 2
        // Predicated region
        $region53: #{tpu_custom_call.1} parent=51 // pred_check
          %p387 = pneg %p143
        $region54: #{tpu_custom_call.1} parent=51 // pred_check_branch
          %389 = sbr.rel (%p387) target = $region56
        $region55: #{tpu_custom_call.1} parent=51 // pred_region
          %p390 = scmp.lt.s32.totalorder %s21, 1
          %s391 = scalar_select %p390, %s21, 1
          %s392 = smul.addr %s391, 8
          %s393 = scalar_lea.vmem %s3, %s392
        $region56: #{tpu_custom_call.1} parent=51 // pred_fallthru
          _
      $region52: #{tpu_custom_call.1} parent=5 // pred_fallthru
        _
    $region6: #{tpu_custom_call.1} parent=1 // loop_footer
      %s19 = sadd.s32 1, %s15
    $region7: #{tpu_custom_call.1} parent=1 // loop_footer_branch
      %14 = sbr.rel target = $region3
    $region8: #{tpu_custom_call.1} parent=1 // loop_exit
      _
    %394 = vsyncpa [#allocation3], 1
    %s395 = scalar_lea.sflag [#allocation3], 1
    %396 = vsyncpa %s395, 1
    %397 = vsyncpa [#allocation5], 1
    %s398 = scalar_lea.sflag [#allocation5], 1
    %399 = vsyncpa %s398, 1

</llo_original>
